<compile_context>
chip_gen: v6e
topology: v6e:2x2x1
jax: 0.10.0
libtpu: 0.0.40
codegen_flags: <defaults>
</compile_context>

<pallas_src>
import math
import functools

import jax
import jax.numpy as jnp
from jax import lax
from jax.experimental import pallas as pl
from jax.experimental.pallas import tpu as pltpu


# ----------------------------------------------------------------------------
# Kernel
# ----------------------------------------------------------------------------
def _pe_kernel(seed_ref, x_ref, pe_ref, o_ref, *,
               scale_in, apply_dropout, threshold, keep_scale):
    x = x_ref[...]
    if scale_in != 1.0:                      # fused embedding scale (free: VALU slack)
        x = x * jnp.asarray(scale_in, dtype=x.dtype)

    pe = pe_ref[...]
    if pe.ndim < x.ndim:                     # (TS, D) -> broadcast over batch axis
        pe = pe[:, None, :]
    y = x + pe

    if apply_dropout:
        shape = y.shape
        rows_per_tile = shape[0]
        # Global flat element index (tiling-independent -> same mask no matter
        # how the grid is split across tiles / TensorCores).
        row0 = (pl.program_id(0) * rows_per_tile).astype(jnp.uint32)
        row = lax.broadcasted_iota(jnp.uint32, shape, 0) + row0
        if y.ndim == 3:
            col = (lax.broadcasted_iota(jnp.uint32, shape, 1) * jnp.uint32(shape[2])
                   + lax.broadcasted_iota(jnp.uint32, shape, 2))
            row_stride = shape[1] * shape[2]
        else:
            col = lax.broadcasted_iota(jnp.uint32, shape, 1)
            row_stride = shape[1]
        idx = row * jnp.uint32(row_stride) + col

        # Mix in the per-call seed, then murmur3-style avalanche (fmix32).
        h = idx + seed_ref[0].astype(jnp.uint32) * jnp.uint32(0x9E3779B9)
        h = h ^ (h >> 16)
        h = h * jnp.uint32(0x85EBCA6B)
        h = h ^ (h >> 13)
        h = h * jnp.uint32(0xC2B2AE35)
        h = h ^ (h >> 16)

        # Unsigned compare: P(drop) = threshold / 2^32 ~= p.
        keep = h >= jnp.uint32(threshold)
        y = jnp.where(keep, y, jnp.zeros_like(y)) * jnp.asarray(keep_scale, dtype=y.dtype)

    o_ref[...] = y.astype(o_ref.dtype)


# ----------------------------------------------------------------------------
# Parameter setup (matches the PyTorch __init__ buffer `pe`)
# ----------------------------------------------------------------------------
def make_positional_encoding_table(d_model, max_len=5000, dtype=jnp.float32):
    position = jnp.arange(max_len, dtype=jnp.float32)[:, None]            # (L, 1)
    div_term = jnp.exp(
        jnp.arange(0, d_model, 2, dtype=jnp.float32) * (-math.log(10000.0) / d_model)
    )                                                                      # (D/2,)
    pe = jnp.zeros((max_len, d_model), dtype=jnp.float32)
    pe = pe.at[:, 0::2].set(jnp.sin(position * div_term))
    pe = pe.at[:, 1::2].set(jnp.cos(position * div_term))
    # pe.unsqueeze(0).transpose(0, 1) -> (max_len, 1, d_model)
    return pe[:, None, :].astype(dtype)


# ----------------------------------------------------------------------------
# Generation-aware budgets + tiling helpers
# ----------------------------------------------------------------------------
def _device_budgets():
    """Return (target_block_bytes, vmem_limit_bytes, multicore?)."""
    vmem = None
    if jax.default_backend() == "tpu":
        try:
            vmem = int(pltpu.get_tpu_info().vmem_capacity_bytes)
        except Exception:
            vmem = None
    if vmem is None:
        # Non-TPU backend (e.g. interpret-mode testing): conservative defaults.
        return 4 * 1024 * 1024, None, False
    if vmem <= 80 * 1024 * 1024:
        # v7x-class: 64 MiB VMEM per TC, 2 TensorCores -> split the seq grid.
        return 8 * 1024 * 1024, 48 * 1024 * 1024, True
    # v5e / v6e class: 128 MiB VMEM, single TensorCore -> bigger tiles.
    return 12 * 1024 * 1024, 96 * 1024 * 1024, False


def _pick_tile_rows(S, row_bytes, target_bytes):
    """Largest sublane-aligned row tile whose x-block is ~target_bytes."""
    ts = max(1, target_bytes // max(1, row_bytes))
    if ts >= S:
        return int(S)                           # full axis is always layout-legal
    ts = max(8, (ts // 8) * 8)                  # keep sublane-aligned blocks
    return int(min(S, ts))


# ----------------------------------------------------------------------------
# Wrapper
# ----------------------------------------------------------------------------
def positional_encoding(x, pe, *, dropout_p=0.1, training=False, seed=0,
                        input_scale=1.0):
    """x: (S, B, D); pe: (max_len, 1, D) or (max_len, D).

    Returns dropout(input_scale * x + pe[:S]) with inverted dropout in training
    mode (eval mode: identity dropout, matching nn.Dropout).
    """
    S, B, D = x.shape
    pe2d = pe.reshape(pe.shape[0], pe.shape[-1]) if pe.ndim == 3 else pe
    if S > pe2d.shape[0]:
        raise ValueError(f"seq_len {S} exceeds positional table max_len {pe2d.shape[0]}")
    if pe2d.shape[1] != D:
        raise ValueError("d_model mismatch between x and pe")
    pe2d = pe2d.astype(x.dtype)                 # no in-kernel promote; half DMA for bf16

    p = float(dropout_p)
    apply_dropout = bool(training) and p > 0.0
    if apply_dropout and p >= 1.0:
        return jnp.zeros_like(x)                # nn.Dropout(p=1): everything dropped

    target_bytes, vmem_limit, multicore = _device_budgets()
    itemsize = jnp.dtype(x.dtype).itemsize

    # Small-shape fallback: make the trailing block dims lane-dense.
    flatten = (B < 8) or (D < 128)
    if flatten:
        W = B * D
        x_in = x.reshape(S, W)
        pe_in = jnp.tile(pe2d[:S], (1, B))      # (S, B*D); matches x row layout
        TS = _pick_tile_rows(S, W * itemsize, target_bytes)
        x_spec = pl.BlockSpec((TS, W), lambda i, s: (i, 0))
        pe_spec = pl.BlockSpec((TS, W), lambda i, s: (i, 0))
        out_spec = pl.BlockSpec((TS, W), lambda i, s: (i, 0))
        out_shape = jax.ShapeDtypeStruct((S, W), x.dtype)
    else:
        x_in = x
        pe_in = pe2d                            # dense 2-D table, sliced by index_map
        TS = _pick_tile_rows(S, B * D * itemsize, target_bytes)
        x_spec = pl.BlockSpec((TS, B, D), lambda i, s: (i, 0, 0))
        pe_spec = pl.BlockSpec((TS, D), lambda i, s: (i, 0))
        out_spec = pl.BlockSpec((TS, B, D), lambda i, s: (i, 0, 0))
        out_shape = jax.ShapeDtypeStruct((S, B, D), x.dtype)

    num_tiles = pl.cdiv(S, TS)
    # v7x: actually shard the seq grid across the 2 TensorCores.
    if multicore and num_tiles >= 2:
        dims = (pltpu.CORE_PARALLEL,)
    else:
        dims = (pltpu.PARALLEL,)

    threshold = min(int(round(p * (1 << 32))), (1 << 32) - 1) if apply_dropout else 0
    kernel = functools.partial(
        _pe_kernel,
        scale_in=float(input_scale),
        apply_dropout=apply_dropout,
        threshold=threshold,
        keep_scale=(1.0 / (1.0 - p)) if apply_dropout else 1.0,
    )
    seed_arr = jnp.array([seed], dtype=jnp.int32)

    out = pl.pallas_call(
        kernel,
        out_shape=out_shape,
        grid_spec=pltpu.PrefetchScalarGridSpec(
            num_scalar_prefetch=1,
            grid=(num_tiles,),
            in_specs=[x_spec, pe_spec],
            out_specs=out_spec,
        ),
        compiler_params=pltpu.CompilerParams(
            dimension_semantics=dims,
            vmem_limit_bytes=vmem_limit,
        ),
    )(seed_arr, x_in, pe_in)

    return out.reshape(S, B, D) if flatten else out


# ----------------------------------------------------------------------------
# Demo / correctness check
# ----------------------------------------------------------------------------
if __name__ == "__main__":
    P = 0.1
    key = jax.random.PRNGKey(0)
    k1, k2 = jax.random.split(key)

    # ---- Small-shape (lane-packed) path: S=8, B=2, D=32 -----------------
    S, B, D = 8, 2, 32
    pe = make_positional_encoding_table(D, max_len=64)
    x = jax.random.normal(k1, (S, B, D), dtype=jnp.float32)

    # Eval mode (deterministic).
    out = jax.block_until_ready(positional_encoding(x, pe, dropout_p=P, training=False))
    ref = x + pe[:S]
    assert out.shape == x.shape and out.dtype == x.dtype
    assert jnp.allclose(out, ref, atol=1e-6, rtol=1e-6), "eval mismatch vs reference"

    # Training mode: every element is 0 or (x+pe)/(1-p); keep rate ~ 1-p.
    out_tr = jax.block_until_ready(
        positional_encoding(x, pe, dropout_p=P, training=True, seed=123))
    scaled = ref / (1.0 - P)
    is_zero = jnp.isclose(out_tr, 0.0, atol=1e-6)
    is_kept = jnp.isclose(out_tr, scaled, atol=1e-5, rtol=1e-5)
    assert out_tr.shape == x.shape and bool(jnp.all(is_zero | is_kept)), \
        "training-mode dropout value mismatch"
    keep_frac = float(jnp.mean(is_kept.astype(jnp.float32)))
    assert 0.75 <= keep_frac <= 0.99, f"dropout keep fraction off: {keep_frac}"

    # Same seed -> identical mask (reproducibility, tiling-independent hash).
    out_tr2 = jax.block_until_ready(
        positional_encoding(x, pe, dropout_p=P, training=True, seed=123))
    assert jnp.allclose(out_tr, out_tr2), "dropout not reproducible for fixed seed"

    # ---- Dense 3-D path + fused embedding scale: S=16, B=8, D=128 -------
    S2, B2, D2 = 16, 8, 128
    pe2 = make_positional_encoding_table(D2, max_len=32)
    x2 = jax.random.normal(k2, (S2, B2, D2), dtype=jnp.float32)
    emb_scale = math.sqrt(D2)
    out2 = jax.block_until_ready(
        positional_encoding(x2, pe2, dropout_p=P, training=False, input_scale=emb_scale))
    ref2 = x2 * emb_scale + pe2[:S2]
    assert jnp.allclose(out2, ref2, atol=1e-4, rtol=1e-4), "dense-path mismatch"

    print("KERNEL_OK")
</pallas_src>

<mosaic_0001>
module attributes {stable_mosaic.version = 11 : i64} {
  func.func @_pe_kernel(%arg0: i32, %arg1: memref<1xi32, #tpu.memory_space<smem>>, %arg2: memref<8x64xf32, #tpu.memory_space<vmem>>, %arg3: memref<8x64xf32, #tpu.memory_space<vmem>>, %arg4: memref<8x64xf32, #tpu.memory_space<vmem>>) attributes {dimension_semantics = [#tpu.dimension_semantics<parallel>], iteration_bounds = array<i64: 1>, scalar_prefetch = 1 : i64, scratch_operands = 0 : i64, tpu.core_type = #tpu.core_type<tc>, window_params = [{transform_indices = @transform_0, window_bounds = array<i64: 8, 64>}, {transform_indices = @transform_1, window_bounds = array<i64: 8, 64>}, {transform_indices = @transform_2, window_bounds = array<i64: 8, 64>}]} {
    %c0 = arith.constant 0 : index
    %c0_0 = arith.constant 0 : index
    %0 = vector.load %arg2[%c0, %c0_0] : memref<8x64xf32, #tpu.memory_space<vmem>>, vector<8x64xf32>
    %c0_1 = arith.constant 0 : index
    %c0_2 = arith.constant 0 : index
    %1 = vector.load %arg3[%c0_1, %c0_2] : memref<8x64xf32, #tpu.memory_space<vmem>>, vector<8x64xf32>
    %2 = arith.addf %0, %1 : vector<8x64xf32>
    %c0_3 = arith.constant 0 : index
    %c0_4 = arith.constant 0 : index
    %3 = vector.load %arg4[%c0_3, %c0_4] : memref<8x64xf32, #tpu.memory_space<vmem>>, vector<8x64xf32>
    tpu.vector_store %arg4[%c0_3, %c0_4], %2 {strides = array<i32>} : memref<8x64xf32, #tpu.memory_space<vmem>>, vector<8x64xf32>,
    return
  }
  func.func @transform_0(%arg0: i32, %arg1: memref<1xi32, #tpu.memory_space<smem>>) -> (i32, i32) {
    %c0_i32 = arith.constant 0 : i32
    %c0_i32_0 = arith.constant 0 : i32
    return %arg0, %c0_i32 : i32, i32
  }
  func.func @transform_1(%arg0: i32, %arg1: memref<1xi32, #tpu.memory_space<smem>>) -> (i32, i32) {
    %c0_i32 = arith.constant 0 : i32
    %c0_i32_0 = arith.constant 0 : i32
    return %arg0, %c0_i32 : i32, i32
  }
  func.func @transform_2(%arg0: i32, %arg1: memref<1xi32, #tpu.memory_space<smem>>) -> (i32, i32) {
    %c0_i32 = arith.constant 0 : i32
    %c0_i32_0 = arith.constant 0 : i32
    return %arg0, %c0_i32 : i32, i32
  }
}

</mosaic_0001>

<llo_original>
// kernel: tpu_custom_call.1
$region0: #{tpu_custom_call.1}
  #allocation0 [shape = 'u32[]', space=smem, size = 0x4, offset = 0x4, fixed_abs, tag = 'smem constant byte address 0x4 - core index']
  #allocation1 [shape = 'u32[144,128]{1,0:T(1,128)}', space=vmem, size = 0x12000, scoped, tag = 'internal scratch']
  #allocation2 [shape = 's32[1]{0}', space=sflag, size = 0x4, scoped, tag = 'scoped memory for tpu_custom_call.1']
  #allocation3 [shape = 's32[1]{0:T(128)S(6)}', space=smem, size = 0x200, scoped, tag = 'prefetched SMEM operand 0']
  %s0 = inlined_call_operand.<no memory space> [shape: s32[1], index: 0, kind: input, shape index: {}]
  %s1 = inlined_call_operand.hbm [shape: f32[8,64], index: 1, kind: input, shape index: {}]
  %s2 = inlined_call_operand.hbm [shape: f32[8,64], index: 2, kind: input, shape index: {}]
  %s3 = inlined_call_operand.hbm [shape: f32[8,64], index: 3, kind: output, shape index: {}]
  %s4 = sld [smem:[#allocation0]]
  $region26: #{tpu_custom_call.1} parent=0
    _
  %s6 = ssub.s32 1, %s4
  %s7 = scalar_select 0, %s6, %s4
  %8 = sst [smem:[#allocation3]] %s0
  $region1: #{tpu_custom_call.1} parent=0
    #allocation4 [shape = 'u8[4096]{0}', space=vmem, size = 0x1000, scoped, tag = 'input window, operand 1, single buffered']
    #allocation5 [shape = 's32[1]{0}', space=sflag, size = 0x4, scoped, tag = 'scoped memory for tpu_custom_call.1']
    #allocation6 [shape = 's32[1]{0}', space=sflag, size = 0x4, scoped, tag = 'scoped memory for tpu_custom_call.1']
    #allocation7 [shape = 'u8[4096]{0}', space=vmem, size = 0x1000, scoped, tag = 'input window, operand 2, single buffered']
    #allocation8 [shape = 's32[1]{0}', space=sflag, size = 0x4, scoped, tag = 'scoped memory for tpu_custom_call.1']
    #allocation9 [shape = 'u8[4096]{0}', space=vmem, size = 0x1000, scoped, tag = 'output window, operand 0, single buffered']
    %9 = vsyncpa [#allocation5], 0
    %10 = vsyncpa [#allocation8], 0
    %11 = vsyncpa [#allocation6], 0
    // Predicated region
    $region2: #{tpu_custom_call.1} parent=1 // pred_check
      _
    $region3: #{tpu_custom_call.1} parent=1 // pred_check_branch
      %13 = sbr.rel (0) target = $region5
    $region4: #{tpu_custom_call.1} parent=1 // pred_region
      %s15 = ssub.s32 128, 128
      %16 = vsyncadd [#allocation5], %s15
      %s18 = sshll.u32 [#allocation4], 4
      %s19 = int_to_ptr.vmem [resolvable:$true] %s18
      %21 = dma.hbm_to_vmem [thread:$0]  %s1, 128, %s19, [#allocation5]
    $region5: #{tpu_custom_call.1} parent=1 // pred_fallthru
      _
    // Predicated region
    $region6: #{tpu_custom_call.1} parent=1 // pred_check
      _
    $region7: #{tpu_custom_call.1} parent=1 // pred_check_branch
      %23 = sbr.rel (0) target = $region9
    $region8: #{tpu_custom_call.1} parent=1 // pred_region
      %s25 = ssub.s32 128, 128
      %26 = vsyncadd [#allocation8], %s25
      %s28 = sshll.u32 [#allocation7], 4
      %s29 = int_to_ptr.vmem [resolvable:$true] %s28
      %31 = dma.hbm_to_vmem [thread:$0]  %s2, 128, %s29, [#allocation8]
    $region9: #{tpu_custom_call.1} parent=1 // pred_fallthru
      _
    // Predicated region
    $region10: #{tpu_custom_call.1} parent=1 // pred_check
      _
    $region11: #{tpu_custom_call.1} parent=1 // pred_check_branch
      %33 = sbr.rel (0) target = $region13
    $region12: #{tpu_custom_call.1} parent=1 // pred_region
      %34 = dma.done [#allocation5], 128
    $region13: #{tpu_custom_call.1} parent=1 // pred_fallthru
      _
    // Predicated region
    $region14: #{tpu_custom_call.1} parent=1 // pred_check
      _
    $region15: #{tpu_custom_call.1} parent=1 // pred_check_branch
      %36 = sbr.rel (0) target = $region17
    $region16: #{tpu_custom_call.1} parent=1 // pred_region
      %37 = dma.done [#allocation8], 128
    $region17: #{tpu_custom_call.1} parent=1 // pred_fallthru
      _
    %v38 = vld [vmem:[#allocation4] sm:$0xff]
    %v39 = vld [vmem:[#allocation7] sm:$0xff]
    %v40 = vadd.f32 %v38, %v39
    %vm41 = vcmask 523264
    %42 = vst.msk [vmem:[#allocation9] sm:$0xff] %vm41, %v40
    // Predicated region
    $region18: #{tpu_custom_call.1} parent=1 // pred_check
      _
    $region19: #{tpu_custom_call.1} parent=1 // pred_check_branch
      %44 = sbr.rel (0) target = $region21
    $region20: #{tpu_custom_call.1} parent=1 // pred_region
      %s46 = ssub.s32 128, 128
      %47 = vsyncadd [#allocation6], %s46
      %s49 = sshll.u32 [#allocation9], 4
      %s50 = int_to_ptr.vmem [resolvable:$true] %s49
      %52 = dma.vmem_to_hbm [thread:$0]  %s50, 128, %s3, [#allocation6]
    $region21: #{tpu_custom_call.1} parent=1 // pred_fallthru
      _
    // Predicated region
    $region22: #{tpu_custom_call.1} parent=1 // pred_check
      _
    $region23: #{tpu_custom_call.1} parent=1 // pred_check_branch
      %54 = sbr.rel (0) target = $region25
    $region24: #{tpu_custom_call.1} parent=1 // pred_region
      %55 = dma.done [#allocation6], 128
    $region25: #{tpu_custom_call.1} parent=1 // pred_fallthru
      _
    %56 = vsyncpa [#allocation5], 1
    %57 = vsyncpa [#allocation8], 1
    %58 = vsyncpa [#allocation6], 1

</llo_original>
